<compile_context>
chip_gen: v6e
topology: v6e:2x2x1
jax: 0.10.0
libtpu: 0.0.40
codegen_flags: <defaults>
</compile_context>

<pallas_src>
import jax
import jax.numpy as jnp
from jax.experimental import pallas as pl


class ShapeException(Exception):
    """Exact port of the PyTorch ShapeException."""

    def __init__(self, shape_to_pass):
        self.shape_to_pass = shape_to_pass

    def __str__(self):
        return repr(self.shape_to_pass)

    def getShape(self):
        return self.shape_to_pass


_LANES = 128


def _sublanes_for(dtype):
    """Packed-sublane multiple for the dtype: 8 (4B), 16 (2B), 32 (1B)."""
    itemsize = int(jnp.dtype(dtype).itemsize)
    return max(8, 32 // max(itemsize, 1))


def _probe_kernel(x_ref, o_ref):
    # One lane-dense, vreg-aligned tile; every element written exactly once
    # (full unmasked vst, no partial stores).
    o_ref[...] = x_ref[...]


def _build_probe_tile(x):
    """Build one (sublanes, 128) tile from (at most) the leading elements of x.

    Only a few KiB are ever touched: the flatten is a contiguous-view reshape
    and the pad (if any) acts on the tiny tile, never the full tensor.
    """
    sub = _sublanes_for(x.dtype)
    tile_elems = sub * _LANES
    n = int(x.size)
    if n == 0:
        # Zero-element inputs: probe a zeros tile so the Pallas path still runs.
        return jnp.zeros((sub, _LANES), dtype=x.dtype)
    flat = x.reshape(-1)
    k = min(n, tile_elems)
    head = flat[:k]
    if k < tile_elems:
        head = jnp.pad(head, (0, tile_elems - k))
    return head.reshape(sub, _LANES)


def _shape_probe(x):
    """Run the single-tile Pallas identity probe on-device."""
    tile = _build_probe_tile(x)
    # Single invocation, whole tile resident in VMEM (no grid): the probe is
    # one dtype-packed vreg-aligned tile (~4 KiB), so pipelining / multi-step
    # grids / per-generation VMEM tuning are irrelevant — it is essentially
    # free on v5e / v6e / v7x.
    return pl.pallas_call(
        _probe_kernel,
        out_shape=jax.ShapeDtypeStruct(tile.shape, tile.dtype),
    )(tile)


def raise_exception_shape(x):
    """Pallas equivalent of RaiseExceptionShape.forward."""
    # TODO(synk): `raise ShapeException(input.shape)` is host-side Python
    # control flow over static shape metadata; it has no Pallas equivalent.
    # The tiny probe is dispatched asynchronously (no host sync on the
    # critical path) purely to exercise a real Pallas TPU path.
    _shape_probe(x)
    raise ShapeException(tuple(x.shape))


if __name__ == "__main__":
    key = jax.random.PRNGKey(0)
    x = jax.random.normal(key, (2, 4, 16, 16), dtype=jnp.float32)

    # 1) The Pallas probe kernel runs clean on TPU and is an exact identity.
    probe = jax.block_until_ready(_shape_probe(x))
    expected = _build_probe_tile(x)
    assert probe.shape == expected.shape
    assert jnp.array_equal(probe, expected), "probe copy mismatch"

    # 2) Module semantics: forward raises ShapeException carrying input.shape.
    raised = False
    try:
        raise_exception_shape(x)
    except ShapeException as e:
        raised = True
        assert e.getShape() == (2, 4, 16, 16), e.getShape()
        assert str(e) == repr((2, 4, 16, 16))
    assert raised, "ShapeException was not raised"

    # 3) Ragged flat size (smaller than one tile) still probes correctly.
    y = jax.random.normal(jax.random.PRNGKey(1), (3, 5, 7), dtype=jnp.float32)
    probe_y = jax.block_until_ready(_shape_probe(y))
    assert jnp.array_equal(probe_y, _build_probe_tile(y)), "probe mismatch (ragged)"
    raised_y = False
    try:
        raise_exception_shape(y)
    except ShapeException as e:
        raised_y = True
        assert e.getShape() == (3, 5, 7), e.getShape()
    assert raised_y, "ShapeException was not raised (ragged size)"

    # 4) Zero-element inputs no longer crash (previous version divided by zero).
    z = jnp.zeros((0, 4), dtype=jnp.float32)
    jax.block_until_ready(_shape_probe(z))
    raised_z = False
    try:
        raise_exception_shape(z)
    except ShapeException as e:
        raised_z = True
        assert e.getShape() == (0, 4), e.getShape()
    assert raised_z, "ShapeException was not raised (zero-size input)"

    print("KERNEL_OK")
</pallas_src>

<mosaic_0001>
module attributes {stable_mosaic.version = 11 : i64} {
  func.func @_probe_kernel(%arg0: memref<8x128xf32, #tpu.memory_space<vmem>>, %arg1: memref<8x128xf32, #tpu.memory_space<vmem>>) attributes {dimension_semantics = [], scalar_prefetch = 0 : i64, scratch_operands = 0 : i64, tpu.core_type = #tpu.core_type<tc>} {
    %c0 = arith.constant 0 : index
    %c0_0 = arith.constant 0 : index
    %0 = vector.load %arg0[%c0, %c0_0] : memref<8x128xf32, #tpu.memory_space<vmem>>, vector<8x128xf32>
    %c0_1 = arith.constant 0 : index
    %c0_2 = arith.constant 0 : index
    %1 = vector.load %arg1[%c0_1, %c0_2] : memref<8x128xf32, #tpu.memory_space<vmem>>, vector<8x128xf32>
    tpu.vector_store %arg1[%c0_1, %c0_2], %0 {strides = array<i32>} : memref<8x128xf32, #tpu.memory_space<vmem>>, vector<8x128xf32>,
    return
  }
}

</mosaic_0001>

<llo_original>
// kernel: tpu_custom_call.1
$region0: #{tpu_custom_call.1}
  #allocation0 [shape = 'u32[]', space=smem, size = 0x4, offset = 0x4, fixed_abs, tag = 'smem constant byte address 0x4 - core index']
  #allocation1 [shape = 'u32[144,128]{1,0:T(1,128)}', space=vmem, size = 0x12000, scoped, tag = 'internal scratch']
  %s0 = inlined_call_operand.hbm [shape: f32[8,128], index: 0, kind: input, shape index: {}]
  %s1 = inlined_call_operand.hbm [shape: f32[8,128], index: 1, kind: output, shape index: {}]
  %s2 = sld [smem:[#allocation0]]
  $region18: #{tpu_custom_call.1} parent=0
    _
  %s4 = ssub.s32 1, %s2
  %s5 = scalar_select 0, %s4, %s2
  $region1: #{tpu_custom_call.1} parent=0
    #allocation2 [shape = 'u8[4096]{0}', space=vmem, size = 0x1000, scoped, tag = 'input window, operand 0, single buffered']
    #allocation3 [shape = 's32[1]{0}', space=sflag, size = 0x4, scoped, tag = 'scoped memory for tpu_custom_call.1']
    #allocation4 [shape = 's32[1]{0}', space=sflag, size = 0x4, scoped, tag = 'scoped memory for tpu_custom_call.1']
    #allocation5 [shape = 'u8[4096]{0}', space=vmem, size = 0x1000, scoped, tag = 'output window, operand 0, single buffered']
    %6 = vsyncpa [#allocation3], 0
    %7 = vsyncpa [#allocation4], 0
    // Predicated region
    $region2: #{tpu_custom_call.1} parent=1 // pred_check
      _
    $region3: #{tpu_custom_call.1} parent=1 // pred_check_branch
      %9 = sbr.rel (0) target = $region5
    $region4: #{tpu_custom_call.1} parent=1 // pred_region
      %s11 = ssub.s32 128, 128
      %12 = vsyncadd [#allocation3], %s11
      %s14 = sshll.u32 [#allocation2], 4
      %s15 = int_to_ptr.vmem [resolvable:$true] %s14
      %17 = dma.hbm_to_vmem [thread:$0]  %s0, 128, %s15, [#allocation3]
    $region5: #{tpu_custom_call.1} parent=1 // pred_fallthru
      _
    // Predicated region
    $region6: #{tpu_custom_call.1} parent=1 // pred_check
      _
    $region7: #{tpu_custom_call.1} parent=1 // pred_check_branch
      %19 = sbr.rel (0) target = $region9
    $region8: #{tpu_custom_call.1} parent=1 // pred_region
      %20 = dma.done [#allocation3], 128
    $region9: #{tpu_custom_call.1} parent=1 // pred_fallthru
      _
    %v21 = vld [vmem:[#allocation2] sm:$0xff]
    %22 = vst [vmem:[#allocation5] sm:$0xff] %v21
    // Predicated region
    $region10: #{tpu_custom_call.1} parent=1 // pred_check
      _
    $region11: #{tpu_custom_call.1} parent=1 // pred_check_branch
      %24 = sbr.rel (0) target = $region13
    $region12: #{tpu_custom_call.1} parent=1 // pred_region
      %s26 = ssub.s32 128, 128
      %27 = vsyncadd [#allocation4], %s26
      %s29 = sshll.u32 [#allocation5], 4
      %s30 = int_to_ptr.vmem [resolvable:$true] %s29
      %32 = dma.vmem_to_hbm [thread:$0]  %s30, 128, %s1, [#allocation4]
    $region13: #{tpu_custom_call.1} parent=1 // pred_fallthru
      _
    // Predicated region
    $region14: #{tpu_custom_call.1} parent=1 // pred_check
      _
    $region15: #{tpu_custom_call.1} parent=1 // pred_check_branch
      %34 = sbr.rel (0) target = $region17
    $region16: #{tpu_custom_call.1} parent=1 // pred_region
      %35 = dma.done [#allocation4], 128
    $region17: #{tpu_custom_call.1} parent=1 // pred_fallthru
      _
    %36 = vsyncpa [#allocation3], 1
    %37 = vsyncpa [#allocation4], 1

</llo_original>
